<compile_context>
chip_gen: v5e
topology: v5e:2x2
jax: 0.10.0
libtpu: 0.0.40
codegen_flags: <defaults>
</compile_context>

<pallas_src>
import functools
import math

import jax
import jax.numpy as jnp
from jax import lax
from jax.experimental import pallas as pl
from jax.experimental.pallas import tpu as pltpu

_INV_SQRT2 = 1.0 / math.sqrt(2.0)
_SQRT_2_OVER_PI = math.sqrt(2.0 / math.pi)


def _erf_f32(x):
    """erf to |err| <= 1.5e-7 (Abramowitz & Stegun 7.1.26).

    Only exp / mul / add / div / select, so it lowers on every Mosaic
    generation without relying on an erf primitive lowering rule.
    """
    a1 = jnp.float32(0.254829592)
    a2 = jnp.float32(-0.284496736)
    a3 = jnp.float32(1.421413741)
    a4 = jnp.float32(-1.453152027)
    a5 = jnp.float32(1.061405429)
    p = jnp.float32(0.3275911)
    ax = jnp.abs(x)
    t = 1.0 / (1.0 + p * ax)
    poly = ((((a5 * t + a4) * t + a3) * t + a2) * t + a1) * t
    y = 1.0 - poly * jnp.exp(-ax * ax)          # exp -> EUP slot
    return jnp.where(x >= 0, y, -y)


def _project_readout_kernel(t_ref, w_ref, rb_ref, o_ref, *, approximate_gelu):
    """One (row-tile, batch) grid point.

    t_ref : [1, TM, C]  token rows x[b, start_index:][tile]  (compute dtype)
    w_ref : [C, C]      token half of the Linear weight      (compute dtype)
    rb_ref: [1, 1, C]   per-batch row bias = x[b,0] @ W_cls + bias   (f32)
    o_ref : [1, TM, C]
    """
    acc = jnp.dot(t_ref[0], w_ref[...], preferred_element_type=jnp.float32)
    acc = acc + rb_ref[0]                        # (1, C) broadcast over TM rows
    if approximate_gelu:
        # tanh GELU: transcendental goes to the otherwise-idle EUP slot.
        c = jnp.float32(_SQRT_2_OVER_PI)
        y = 0.5 * acc * (1.0 + jnp.tanh(c * (acc + 0.044715 * acc * acc * acc)))
    else:
        # Exact (erf) GELU, matching torch.nn.GELU() default to ~1e-7.
        y = 0.5 * acc * (1.0 + _erf_f32(acc * jnp.float32(_INV_SQRT2)))
    o_ref[0] = y.astype(o_ref.dtype)


def _vmem_config():
    """Return (vmem_limit_bytes, tiling budget) per TPU generation."""
    cap = None
    try:
        cap = getattr(pltpu.get_tpu_info(), "vmem_capacity_bytes", None)
    except Exception:                      # unknown platform: stay conservative
        cap = None
    if cap is None:
        cap = 64 << 20
    if cap >= (100 << 20):                 # v5e / v6e: 128 MiB physical VMEM
        return 96 << 20, 64 << 20
    return 48 << 20, 40 << 20              # v7x: 64 MiB per TensorCore


def _pick_row_tile(n_tok, C, bytes_in, bytes_out, budget, weight_buffers=1):
    """Largest row tile whose double-buffered token/out tiles + resident weight
    fit the tiling budget; aligned to bf16 packing / MXU granularity."""
    w_resident = weight_buffers * C * C * bytes_in
    avail = max(budget - w_resident, 1 << 20)
    tm = avail // (2 * C * (bytes_in + bytes_out))   # 2 bufs x (in + out tile)
    if tm >= n_tok:
        return n_tok                                  # full extent: always legal
    for align in (256, 128, 16, 8):
        if tm >= align:
            return int((tm // align) * align)
    return n_tok                                      # degenerate corner case


def project_readout_pallas(x, weight, bias, start_index=1,
                           compute_dtype=jnp.bfloat16, approximate_gelu=False):
    """x: [B, T, C], weight: [2C, C] (in, out layout), bias: [C].

    Returns GELU(concat(x[:, start_index:], broadcast(x[:, 0])) @ weight + bias)
    with shape [B, T - start_index, C].
    """
    B, T, C = x.shape
    n_tok = T - start_index
    out_dtype = x.dtype
    if compute_dtype is None:
        compute_dtype = jnp.bfloat16

    # ---- plain-JAX glue: fold the broadcast CLS half into a per-batch bias ----
    # NOTE: this half stays f32 / HIGHEST regardless of compute_dtype, so the
    # bf16 path's error is dominated by the token-half matmul only.
    w_tok = weight[:C, :].astype(compute_dtype)                    # [C, C]
    w_cls = weight[C:, :].astype(jnp.float32)                      # [C, C]
    row_bias = (jnp.dot(x[:, 0, :].astype(jnp.float32), w_cls,
                        precision=lax.Precision.HIGHEST)
                + bias.astype(jnp.float32)[None, :]).reshape(B, 1, C)

    # Slice + cast of token rows; with allow_input_fusion (under an outer jit)
    # XLA fuses this into the kernel's input DMA instead of an HBM round trip.
    tokens = x[:, start_index:, :].astype(compute_dtype)           # [B, n_tok, C]

    vmem_limit, budget = _vmem_config()
    bytes_in = jnp.dtype(compute_dtype).itemsize
    bytes_out = jnp.dtype(out_dtype).itemsize
    TM = _pick_row_tile(n_tok, C, bytes_in, bytes_out, budget, weight_buffers=1)
    num_tiles = pl.cdiv(n_tok, TM)

    kernel = functools.partial(_project_readout_kernel,
                               approximate_gelu=approximate_gelu)
    cost = pl.CostEstimate(
        flops=2 * B * n_tok * C * C,
        transcendentals=B * n_tok * C,
        bytes_accessed=(B * n_tok * C * (bytes_in + bytes_out)
                        + C * C * bytes_in + B * C * 4))

    def build(single_buffer_weight):
        w_kwargs = {}
        if single_buffer_weight and hasattr(pl, "Buffered"):
            # Constant index_map -> nothing to pipeline; reclaim one buffer.
            w_kwargs["pipeline_mode"] = pl.Buffered(1)
        return pl.pallas_call(
            kernel,
            out_shape=jax.ShapeDtypeStruct((B, n_tok, C), out_dtype),
            # Row-tile axis leads so megacore (v7x) shards the long axis.
            grid=(num_tiles, B),
            in_specs=[
                pl.BlockSpec((1, TM, C), lambda i, b: (b, i, 0)),        # tokens
                pl.BlockSpec((C, C), lambda i, b: (0, 0), **w_kwargs),   # weight
                pl.BlockSpec((1, 1, C), lambda i, b: (b, 0, 0)),         # row bias
            ],
            out_specs=pl.BlockSpec((1, TM, C), lambda i, b: (b, i, 0)),
            compiler_params=pltpu.CompilerParams(
                dimension_semantics=("parallel", "parallel"),
                vmem_limit_bytes=vmem_limit,
                allow_input_fusion=[True, False, False]),
            cost_estimate=cost,
        )

    try:
        out = build(True)(tokens, w_tok, row_bias)
    except Exception:
        # Fallback if this jax version rejects single-buffered BlockSpecs.
        out = build(False)(tokens, w_tok, row_bias)
    return out


def reference_jax(x, weight, bias, start_index=1):
    B, T, C = x.shape
    n_tok = T - start_index
    tokens = x[:, start_index:, :]
    readout = jnp.broadcast_to(x[:, 0:1, :], (B, n_tok, C))
    features = jnp.concatenate([tokens, readout], axis=-1)
    y = jnp.dot(features, weight, precision=lax.Precision.HIGHEST) + bias
    return jax.nn.gelu(y, approximate=False)        # exact erf GELU (torch default)


if __name__ == "__main__":
    # Small shapes consistent with the module: batch=2, tokens=9 (1 cls + 8),
    # in_features=32.
    B, T, C = 2, 9, 32
    start_index = 1

    key = jax.random.PRNGKey(0)
    kx, kw, kb = jax.random.split(key, 3)
    x = jax.random.normal(kx, (B, T, C), dtype=jnp.float32)

    # PyTorch-style Linear(2C, C) init bound; we store weight as [in, out].
    fan_in = 2 * C
    bound = 1.0 / math.sqrt(fan_in)
    weight = jax.random.uniform(kw, (2 * C, C), minval=-bound, maxval=bound,
                                dtype=jnp.float32)
    bias = jax.random.uniform(kb, (C,), minval=-bound, maxval=bound,
                              dtype=jnp.float32)

    ref = reference_jax(x, weight, bias, start_index=start_index)

    # Default path: bf16 MXU inputs, f32 accumulate / bias / GELU.
    out_bf16 = jax.block_until_ready(
        project_readout_pallas(x, weight, bias, start_index=start_index))
    assert out_bf16.shape == (B, T - start_index, C)
    assert jnp.allclose(out_bf16.astype(jnp.float32), ref, atol=5e-2, rtol=5e-2)

    # Strict f32 path for torch parity.
    out_f32 = jax.block_until_ready(
        project_readout_pallas(x, weight, bias, start_index=start_index,
                               compute_dtype=jnp.float32))
    assert jnp.allclose(out_f32, ref, atol=1e-4, rtol=1e-4)

    # Fast tanh-GELU epilogue (EUP slot) -- looser tolerance by construction.
    out_fast = jax.block_until_ready(
        project_readout_pallas(x, weight, bias, start_index=start_index,
                               approximate_gelu=True))
    assert jnp.allclose(out_fast.astype(jnp.float32), ref, atol=5e-2, rtol=5e-2)

    print("KERNEL_OK")
</pallas_src>

<mosaic_0001>
module attributes {stable_mosaic.version = 11 : i64} {
  func.func @_project_readout_kernel(%arg0: i32, %arg1: i32, %arg2: memref<1x8x32xbf16, #tpu.memory_space<vmem>>, %arg3: memref<32x32xbf16, #tpu.memory_space<vmem>>, %arg4: memref<1x1x32xf32, #tpu.memory_space<vmem>>, %arg5: memref<1x8x32xf32, #tpu.memory_space<vmem>>) attributes {dimension_semantics = [#tpu.dimension_semantics<parallel>, #tpu.dimension_semantics<parallel>], iteration_bounds = array<i64: 1, 2>, scalar_prefetch = 0 : i64, scratch_operands = 0 : i64, tpu.core_type = #tpu.core_type<tc>, window_params = [{transform_indices = @transform_0, window_bounds = array<i64: 1, 8, 32>}, {pipeline_mode = #tpu.pipeline_mode<synchronous>, transform_indices = @transform_1, window_bounds = array<i64: 32, 32>}, {transform_indices = @transform_2, window_bounds = array<i64: 1, 1, 32>}, {transform_indices = @transform_3, window_bounds = array<i64: 1, 8, 32>}]} {
    %c0 = arith.constant 0 : index
    %c0_0 = arith.constant 0 : index
    %c0_1 = arith.constant 0 : index
    %0 = vector.load %arg2[%c0, %c0_0, %c0_1] : memref<1x8x32xbf16, #tpu.memory_space<vmem>>, vector<1x8x32xbf16>
    %1 = vector.shape_cast %0 : vector<1x8x32xbf16> to vector<8x32xbf16>
    %c0_2 = arith.constant 0 : index
    %c0_3 = arith.constant 0 : index
    %2 = vector.load %arg3[%c0_2, %c0_3] : memref<32x32xbf16, #tpu.memory_space<vmem>>, vector<32x32xbf16>
    %cst = arith.constant dense<0.000000e+00> : vector<8x32xf32>
    %3 = tpu.matmul %1, %2, %cst {dimension_numbers = #tpu.dot_dimension_numbers<[1], [0], [0], [1], [0, 0, 1, 1], [], []>} : vector<8x32xbf16>, vector<32x32xbf16>, vector<8x32xf32> -> vector<8x32xf32>
    %c0_4 = arith.constant 0 : index
    %c0_5 = arith.constant 0 : index
    %c0_6 = arith.constant 0 : index
    %4 = vector.load %arg4[%c0_4, %c0_5, %c0_6] : memref<1x1x32xf32, #tpu.memory_space<vmem>>, vector<1x1x32xf32>
    %5 = vector.shape_cast %4 : vector<1x1x32xf32> to vector<1x32xf32>
    %6 = vector.broadcast %5 : vector<1x32xf32> to vector<8x32xf32>
    %7 = arith.addf %3, %6 : vector<8x32xf32>
    %cst_7 = arith.constant 5.000000e-01 : f32
    %8 = vector.broadcast %cst_7 : f32 to vector<8x32xf32>
    %9 = arith.mulf %8, %7 : vector<8x32xf32>
    %cst_8 = arith.constant 0.707106769 : f32
    %10 = vector.broadcast %cst_8 : f32 to vector<8x32xf32>
    %11 = arith.mulf %7, %10 : vector<8x32xf32>
    %12 = math.absf %11 : vector<8x32xf32>
    %cst_9 = arith.constant 0.327591091 : f32
    %13 = vector.broadcast %cst_9 : f32 to vector<8x32xf32>
    %14 = arith.mulf %13, %12 : vector<8x32xf32>
    %cst_10 = arith.constant 1.000000e+00 : f32
    %15 = vector.broadcast %cst_10 : f32 to vector<8x32xf32>
    %16 = arith.addf %15, %14 : vector<8x32xf32>
    %cst_11 = arith.constant 1.000000e+00 : f32
    %17 = vector.broadcast %cst_11 : f32 to vector<8x32xf32>
    %18 = arith.divf %17, %16 : vector<8x32xf32>
    %cst_12 = arith.constant 1.06140542 : f32
    %19 = vector.broadcast %cst_12 : f32 to vector<8x32xf32>
    %20 = arith.mulf %19, %18 : vector<8x32xf32>
    %cst_13 = arith.constant -1.45315206 : f32
    %21 = vector.broadcast %cst_13 : f32 to vector<8x32xf32>
    %22 = arith.addf %20, %21 : vector<8x32xf32>
    %23 = arith.mulf %22, %18 : vector<8x32xf32>
    %cst_14 = arith.constant 1.42141378 : f32
    %24 = vector.broadcast %cst_14 : f32 to vector<8x32xf32>
    %25 = arith.addf %23, %24 : vector<8x32xf32>
    %26 = arith.mulf %25, %18 : vector<8x32xf32>
    %cst_15 = arith.constant -0.284496725 : f32
    %27 = vector.broadcast %cst_15 : f32 to vector<8x32xf32>
    %28 = arith.addf %26, %27 : vector<8x32xf32>
    %29 = arith.mulf %28, %18 : vector<8x32xf32>
    %cst_16 = arith.constant 0.254829586 : f32
    %30 = vector.broadcast %cst_16 : f32 to vector<8x32xf32>
    %31 = arith.addf %29, %30 : vector<8x32xf32>
    %32 = arith.mulf %31, %18 : vector<8x32xf32>
    %cst_17 = arith.constant 0.000000e+00 : f32
    %33 = vector.broadcast %cst_17 : f32 to vector<8x32xf32>
    %34 = arith.subf %33, %12 : vector<8x32xf32>
    %35 = arith.mulf %34, %12 : vector<8x32xf32>
    %36 = math.exp %35 : vector<8x32xf32>
    %37 = arith.mulf %32, %36 : vector<8x32xf32>
    %cst_18 = arith.constant 1.000000e+00 : f32
    %38 = vector.broadcast %cst_18 : f32 to vector<8x32xf32>
    %39 = arith.subf %38, %37 : vector<8x32xf32>
    %cst_19 = arith.constant 0.000000e+00 : f32
    %40 = vector.broadcast %cst_19 : f32 to vector<8x32xf32>
    %41 = arith.cmpf oge, %11, %40 : vector<8x32xf32>
    %cst_20 = arith.constant 0.000000e+00 : f32
    %42 = vector.broadcast %cst_20 : f32 to vector<8x32xf32>
    %43 = arith.subf %42, %39 : vector<8x32xf32>
    %44 = arith.select %41, %39, %43 : vector<8x32xi1>, vector<8x32xf32>
    %cst_21 = arith.constant 1.000000e+00 : f32
    %45 = vector.broadcast %cst_21 : f32 to vector<8x32xf32>
    %46 = arith.addf %45, %44 : vector<8x32xf32>
    %47 = arith.mulf %9, %46 : vector<8x32xf32>
    %c0_22 = arith.constant 0 : index
    %c0_23 = arith.constant 0 : index
    %c0_24 = arith.constant 0 : index
    %48 = vector.load %arg5[%c0_22, %c0_23, %c0_24] : memref<1x8x32xf32, #tpu.memory_space<vmem>>, vector<1x8x32xf32>
    %49 = vector.shape_cast %48 : vector<1x8x32xf32> to vector<8x32xf32>
    %50 = vector.shape_cast %47 : vector<8x32xf32> to vector<1x8x32xf32>
    tpu.vector_store %arg5[%c0_22, %c0_23, %c0_24], %50 {strides = array<i32>} : memref<1x8x32xf32, #tpu.memory_space<vmem>>, vector<1x8x32xf32>,
    return
  }
  func.func @transform_0(%arg0: i32, %arg1: i32) -> (i32, i32, i32) {
    %c0_i32 = arith.constant 0 : i32
    %c0_i32_0 = arith.constant 0 : i32
    return %arg1, %arg0, %c0_i32 : i32, i32, i32
  }
  func.func @transform_1(%arg0: i32, %arg1: i32) -> (i32, i32) {
    %c0_i32 = arith.constant 0 : i32
    %c0_i32_0 = arith.constant 0 : i32
    %c0_i32_1 = arith.constant 0 : i32
    return %c0_i32, %c0_i32_0 : i32, i32
  }
  func.func @transform_2(%arg0: i32, %arg1: i32) -> (i32, i32, i32) {
    %c0_i32 = arith.constant 0 : i32
    %c0_i32_0 = arith.constant 0 : i32
    %c0_i32_1 = arith.constant 0 : i32
    return %arg1, %c0_i32, %c0_i32_0 : i32, i32, i32
  }
  func.func @transform_3(%arg0: i32, %arg1: i32) -> (i32, i32, i32) {
    %c0_i32 = arith.constant 0 : i32
    %c0_i32_0 = arith.constant 0 : i32
    return %arg1, %arg0, %c0_i32 : i32, i32, i32
  }
}

module attributes {stable_mosaic.version = 11 : i64} {
  func.func @_project_readout_kernel(%arg0: i32, %arg1: i32, %arg2: memref<1x8x32xbf16, #tpu.memory_space<vmem>>, %arg3: memref<32x32xbf16, #tpu.memory_space<vmem>>, %arg4: memref<1x1x32xf32, #tpu.memory_space<vmem>>, %arg5: memref<1x8x32xf32, #tpu.memory_space<vmem>>) attributes {dimension_semantics = [#tpu.dimension_semantics<parallel>, #tpu.dimension_semantics<parallel>], iteration_bounds = array<i64: 1, 2>, scalar_prefetch = 0 : i64, scratch_operands = 0 : i64, tpu.core_type = #tpu.core_type<tc>, window_params = [{transform_indices = @transform_0, window_bounds = array<i64: 1, 8, 32>}, {pipeline_mode = #tpu.pipeline_mode<synchronous>, transform_indices = @transform_1, window_bounds = array<i64: 32, 32>}, {transform_indices = @transform_2, window_bounds = array<i64: 1, 1, 32>}, {transform_indices = @transform_3, window_bounds = array<i64: 1, 8, 32>}]} {
    %c0 = arith.constant 0 : index
    %c0_0 = arith.constant 0 : index
    %c0_1 = arith.constant 0 : index
    %0 = vector.load %arg2[%c0, %c0_0, %c0_1] : memref<1x8x32xbf16, #tpu.memory_space<vmem>>, vector<1x8x32xbf16>
    %1 = vector.shape_cast %0 : vector<1x8x32xbf16> to vector<8x32xbf16>
    %c0_2 = arith.constant 0 : index
    %c0_3 = arith.constant 0 : index
    %2 = vector.load %arg3[%c0_2, %c0_3] : memref<32x32xbf16, #tpu.memory_space<vmem>>, vector<32x32xbf16>
    %cst = arith.constant dense<0.000000e+00> : vector<8x32xf32>
    %3 = tpu.matmul %1, %2, %cst {dimension_numbers = #tpu.dot_dimension_numbers<[1], [0], [0], [1], [0, 0, 1, 1], [], []>} : vector<8x32xbf16>, vector<32x32xbf16>, vector<8x32xf32> -> vector<8x32xf32>
    %c0_4 = arith.constant 0 : index
    %c0_5 = arith.constant 0 : index
    %c0_6 = arith.constant 0 : index
    %4 = vector.load %arg4[%c0_4, %c0_5, %c0_6] : memref<1x1x32xf32, #tpu.memory_space<vmem>>, vector<1x1x32xf32>
    %5 = vector.shape_cast %4 : vector<1x1x32xf32> to vector<1x32xf32>
    %6 = vector.broadcast %5 : vector<1x32xf32> to vector<8x32xf32>
    %7 = arith.addf %3, %6 : vector<8x32xf32>
    %cst_7 = arith.constant 5.000000e-01 : f32
    %8 = vector.broadcast %cst_7 : f32 to vector<8x32xf32>
    %9 = arith.mulf %8, %7 : vector<8x32xf32>
    %cst_8 = arith.constant 0.707106769 : f32
    %10 = vector.broadcast %cst_8 : f32 to vector<8x32xf32>
    %11 = arith.mulf %7, %10 : vector<8x32xf32>
    %12 = math.absf %11 : vector<8x32xf32>
    %cst_9 = arith.constant 0.327591091 : f32
    %13 = vector.broadcast %cst_9 : f32 to vector<8x32xf32>
    %14 = arith.mulf %13, %12 : vector<8x32xf32>
    %cst_10 = arith.constant 1.000000e+00 : f32
    %15 = vector.broadcast %cst_10 : f32 to vector<8x32xf32>
    %16 = arith.addf %15, %14 : vector<8x32xf32>
    %cst_11 = arith.constant 1.000000e+00 : f32
    %17 = vector.broadcast %cst_11 : f32 to vector<8x32xf32>
    %18 = arith.divf %17, %16 : vector<8x32xf32>
    %cst_12 = arith.constant 1.06140542 : f32
    %19 = vector.broadcast %cst_12 : f32 to vector<8x32xf32>
    %20 = arith.mulf %19, %18 : vector<8x32xf32>
    %cst_13 = arith.constant -1.45315206 : f32
    %21 = vector.broadcast %cst_13 : f32 to vector<8x32xf32>
    %22 = arith.addf %20, %21 : vector<8x32xf32>
    %23 = arith.mulf %22, %18 : vector<8x32xf32>
    %cst_14 = arith.constant 1.42141378 : f32
    %24 = vector.broadcast %cst_14 : f32 to vector<8x32xf32>
    %25 = arith.addf %23, %24 : vector<8x32xf32>
    %26 = arith.mulf %25, %18 : vector<8x32xf32>
    %cst_15 = arith.constant -0.284496725 : f32
    %27 = vector.broadcast %cst_15 : f32 to vector<8x32xf32>
    %28 = arith.addf %26, %27 : vector<8x32xf32>
    %29 = arith.mulf %28, %18 : vector<8x32xf32>
    %cst_16 = arith.constant 0.254829586 : f32
    %30 = vector.broadcast %cst_16 : f32 to vector<8x32xf32>
    %31 = arith.addf %29, %30 : vector<8x32xf32>
    %32 = arith.mulf %31, %18 : vector<8x32xf32>
    %cst_17 = arith.constant 0.000000e+00 : f32
    %33 = vector.broadcast %cst_17 : f32 to vector<8x32xf32>
    %34 = arith.subf %33, %12 : vector<8x32xf32>
    %35 = arith.mulf %34, %12 : vector<8x32xf32>
    %36 = math.exp %35 : vector<8x32xf32>
    %37 = arith.mulf %32, %36 : vector<8x32xf32>
    %cst_18 = arith.constant 1.000000e+00 : f32
    %38 = vector.broadcast %cst_18 : f32 to vector<8x32xf32>
    %39 = arith.subf %38, %37 : vector<8x32xf32>
    %cst_19 = arith.constant 0.000000e+00 : f32
    %40 = vector.broadcast %cst_19 : f32 to vector<8x32xf32>
    %41 = arith.cmpf oge, %11, %40 : vector<8x32xf32>
    %cst_20 = arith.constant 0.000000e+00 : f32
    %42 = vector.broadcast %cst_20 : f32 to vector<8x32xf32>
    %43 = arith.subf %42, %39 : vector<8x32xf32>
    %44 = arith.select %41, %39, %43 : vector<8x32xi1>, vector<8x32xf32>
    %cst_21 = arith.constant 1.000000e+00 : f32
    %45 = vector.broadcast %cst_21 : f32 to vector<8x32xf32>
    %46 = arith.addf %45, %44 : vector<8x32xf32>
    %47 = arith.mulf %9, %46 : vector<8x32xf32>
    %c0_22 = arith.constant 0 : index
    %c0_23 = arith.constant 0 : index
    %c0_24 = arith.constant 0 : index
    %48 = vector.load %arg5[%c0_22, %c0_23, %c0_24] : memref<1x8x32xf32, #tpu.memory_space<vmem>>, vector<1x8x32xf32>
    %49 = vector.shape_cast %48 : vector<1x8x32xf32> to vector<8x32xf32>
    %50 = vector.shape_cast %47 : vector<8x32xf32> to vector<1x8x32xf32>
    tpu.vector_store %arg5[%c0_22, %c0_23, %c0_24], %50 {strides = array<i32>} : memref<1x8x32xf32, #tpu.memory_space<vmem>>, vector<1x8x32xf32>,
    return
  }
  func.func @transform_0(%arg0: i32, %arg1: i32) -> (i32, i32, i32) {
    %c0_i32 = arith.constant 0 : i32
    %c0_i32_0 = arith.constant 0 : i32
    return %arg1, %arg0, %c0_i32 : i32, i32, i32
  }
  func.func @transform_1(%arg0: i32, %arg1: i32) -> (i32, i32) {
    %c0_i32 = arith.constant 0 : i32
    %c0_i32_0 = arith.constant 0 : i32
    %c0_i32_1 = arith.constant 0 : i32
    return %c0_i32, %c0_i32_0 : i32, i32
  }
  func.func @transform_2(%arg0: i32, %arg1: i32) -> (i32, i32, i32) {
    %c0_i32 = arith.constant 0 : i32
    %c0_i32_0 = arith.constant 0 : i32
    %c0_i32_1 = arith.constant 0 : i32
    return %arg1, %c0_i32, %c0_i32_0 : i32, i32, i32
  }
  func.func @transform_3(%arg0: i32, %arg1: i32) -> (i32, i32, i32) {
    %c0_i32 = arith.constant 0 : i32
    %c0_i32_0 = arith.constant 0 : i32
    return %arg1, %arg0, %c0_i32 : i32, i32, i32
  }
}

</mosaic_0001>

<llo_original>
// kernel: tpu_custom_call.1
$region0: #{tpu_custom_call.1}
  #allocation0 [shape = 'u32[]', space=smem, size = 0x4, offset = 0x4, fixed_abs, tag = 'smem constant byte address 0x4 - core index']
  #allocation1 [shape = 'u32[72,128]{1,0:T(1,128)}', space=vmem, size = 0x9000, scoped, tag = 'internal scratch']
  %s0 = inlined_call_operand.hbm [shape: bf16[2,8,32], index: 0, kind: input, shape index: {}]
  %s1 = inlined_call_operand.hbm [shape: bf16[32,32], index: 1, kind: input, shape index: {}]
  %s2 = inlined_call_operand.hbm [shape: f32[2,1,32], index: 2, kind: input, shape index: {}]
  %s3 = inlined_call_operand.hbm [shape: f32[2,8,32], index: 3, kind: output, shape index: {}]
  %s4 = sld [smem:[#allocation0]]
  $region57: #{tpu_custom_call.1} parent=0
    _
  %s6 = ssub.s32 1, %s4
  %s7 = scalar_select 0, %s6, %s4
  $region1: #{tpu_custom_call.1} parent=0
    #allocation2 [shape = 'u8[4096]{0}', space=vmem, size = 0x1000, scoped, tag = 'input window, operand 0']
    #allocation3 [shape = 's32[2]{0}', space=sflag, size = 0x8, scoped, tag = 'scoped memory for tpu_custom_call.1']
    #allocation4 [shape = 's32[2]{0}', space=sflag, size = 0x8, scoped, tag = 'scoped memory for tpu_custom_call.1']
    #allocation5 [shape = 'u8[8192]{0}', space=vmem, size = 0x2000, scoped, tag = 'input window, operand 1, single buffered']
    #allocation6 [shape = 's32[1]{0}', space=sflag, size = 0x4, scoped, tag = 'scoped memory for tpu_custom_call.1']
    #allocation7 [shape = 'u8[1024]{0}', space=vmem, size = 0x400, scoped, tag = 'input window, operand 2']
    #allocation8 [shape = 'u8[8192]{0}', space=vmem, size = 0x2000, scoped, tag = 'output window, operand 0']
    %8 = vsyncpa [#allocation3], 0
    %s9 = scalar_lea.sflag [#allocation3], 1
    %10 = vsyncpa %s9, 0
    %11 = vsyncpa [#allocation6], 0
    %12 = vsyncpa [#allocation4], 0
    %s13 = scalar_lea.sflag [#allocation4], 1
    %14 = vsyncpa %s13, 0
    loop: start=0, step=1, limit=4
    $region2: #{tpu_custom_call.1} parent=1 // loop_pre_header
      _
    $region3: #{tpu_custom_call.1} parent=1 // loop_header
      %s16 = sphi 0, %s20
      %p17 = scmp.ge.s32.totalorder %s16, 4
      %s23 = sphi 0, %s35
      %s24 = sphi 0, %s31
      %s25 = sphi 0, %s23
      %s26 = sphi 0, %s24
      %s27 = sphi 0, %s25
      %s28 = sphi 0, %s26
      %s40 = sphi 0, %s42
      %s43 = sphi 0, %s40
      %s44 = sphi 0, %s43
      %s60 = sphi 0, %s44
      %s64 = sphi 0, %s64
      %s66 = sphi 0, %s64
      %s67 = sphi 0, %s66
      %s81 = sphi 0, %s67
      %s87 = sphi 0, %s89
      %s90 = sphi 0, %s87
      %s91 = sphi 0, %s90
      %s107 = sphi 0, %s91
      %s115 = sphi 0, %s117
      %s118 = sphi 0, %s115
      %s119 = sphi 0, %s118
      %s135 = sphi 0, %s119
    $region4: #{tpu_custom_call.1} parent=1 // loop_header_branch
      %19 = sbr.rel (%p17) target = $region8
    $region5: #{tpu_custom_call.1} parent=1 // loop_body
      %s21 = ssub.s32 %s16, 1
      %s22 = ssub.s32 %s16, 2
      %s29 = sadd.s32 1, %s24
      %p30 = scmp.ge.s32.totalorder %s29, 2
      %s31 = scalar_select %p30, 0, %s29
      %s32 = sadd.s32 1, %s23
      %s33 = scalar_select %p30, %s32, %s23
      %p34 = scmp.ge.s32.totalorder %s33, 1
      %s35 = scalar_select %p34, 0, %s33
      %s36 = ssub.s32 %s24, %s31
      %s37 = ssub.s32 %s23, %s35
      %s38 = sor.u32 %s36, %s37
      %p39 = scmp.eq.s32.totalorder %s38, 0
      %s41 = sadd.s32 %s40, 1
      %s42 = scalar_select %p39, %s40, %s41
      %p45 = pneg %p39
      %p46 = scmp.eq.s32.totalorder %s16, 1
      %p47 = por %p45, %p46
      %p48 = scmp.ne.s32.totalorder %s40, %s43
      %p49 = scmp.eq.s32.totalorder %s16, 0
      %p50 = por %p48, %p49
      %p51 = scmp.ne.s32.totalorder %s40, %s43
      %p52 = scmp.eq.s32.totalorder %s21, 1
      %p53 = por %p51, %p52
      %p54 = scmp.ne.s32.totalorder %s43, %s44
      %p55 = scmp.eq.s32.totalorder %s21, 0
      %p56 = por %p54, %p55
      %p57 = scmp.ne.s32.totalorder %s43, %s44
      %p58 = scmp.eq.s32.totalorder %s22, 1
      %p59 = por %p57, %p58
      %p61 = scmp.ne.s32.totalorder %s44, %s60
      %p62 = scmp.eq.s32.totalorder %s22, 0
      %p63 = por %p61, %p62
      %s65 = sadd.s32 %s64, 1
      %p68 = scmp.eq.s32.totalorder %s16, 1
      %p69 = scmp.ne.s32.totalorder %s64, %s66
      %p70 = scmp.eq.s32.totalorder %s16, 0
      %p71 = por %p69, %p70
      %p72 = scmp.ne.s32.totalorder %s64, %s66
      %p73 = scmp.eq.s32.totalorder %s21, 1
      %p74 = por %p72, %p73
      %p75 = scmp.ne.s32.totalorder %s66, %s67
      %p76 = scmp.eq.s32.totalorder %s21, 0
      %p77 = por %p75, %p76
      %p78 = scmp.ne.s32.totalorder %s66, %s67
      %p79 = scmp.eq.s32.totalorder %s22, 1
      %p80 = por %p78, %p79
      %p82 = scmp.ne.s32.totalorder %s67, %s81
      %p83 = scmp.eq.s32.totalorder %s22, 0
      %p84 = por %p82, %p83
      %s85 = ssub.s32 %s24, %s31
      %p86 = scmp.eq.s32.totalorder %s85, 0
      %s88 = sadd.s32 %s87, 1
      %s89 = scalar_select %p86, %s87, %s88
      %p92 = pneg %p86
      %p93 = scmp.eq.s32.totalorder %s16, 1
      %p94 = por %p92, %p93
      %p95 = scmp.ne.s32.totalorder %s87, %s90
      %p96 = scmp.eq.s32.totalorder %s16, 0
      %p97 = por %p95, %p96
      %p98 = scmp.ne.s32.totalorder %s87, %s90
      %p99 = scmp.eq.s32.totalorder %s21, 1
      %p100 = por %p98, %p99
      %p101 = scmp.ne.s32.totalorder %s90, %s91
      %p102 = scmp.eq.s32.totalorder %s21, 0
      %p103 = por %p101, %p102
      %p104 = scmp.ne.s32.totalorder %s90, %s91
      %p105 = scmp.eq.s32.totalorder %s22, 1
      %p106 = por %p104, %p105
      %p108 = scmp.ne.s32.totalorder %s91, %s107
      %p109 = scmp.eq.s32.totalorder %s22, 0
      %p110 = por %p108, %p109
      %s111 = ssub.s32 %s24, %s31
      %s112 = ssub.s32 %s23, %s35
      %s113 = sor.u32 %s111, %s112
      %p114 = scmp.eq.s32.totalorder %s113, 0
      %s116 = sadd.s32 %s115, 1
      %s117 = scalar_select %p114, %s115, %s116
      %p120 = pneg %p114
      %p121 = scmp.eq.s32.totalorder %s16, 1
      %p122 = por %p120, %p121
      %p123 = scmp.ne.s32.totalorder %s115, %s118
      %p124 = scmp.eq.s32.totalorder %s16, 0
      %p125 = por %p123, %p124
      %p126 = scmp.ne.s32.totalorder %s115, %s118
      %p127 = scmp.eq.s32.totalorder %s21, 1
      %p128 = por %p126, %p127
      %p129 = scmp.ne.s32.totalorder %s118, %s119
      %p130 = scmp.eq.s32.totalorder %s21, 0
      %p131 = por %p129, %p130
      %p132 = scmp.ne.s32.totalorder %s118, %s119
      %p133 = scmp.eq.s32.totalorder %s22, 1
      %p134 = por %p132, %p133
      %p136 = scmp.ne.s32.totalorder %s119, %s135
      %p137 = scmp.eq.s32.totalorder %s22, 0
      %p138 = por %p136, %p137
      %p139 = scmp.le.s32.totalorder 1, %s16
      %p140 = scmp.lt.s32.totalorder %s16, 3
      %p141 = pnand %p139, %p140
      %p142 = pneg %p141
      // Predicated region
      $region9: #{tpu_custom_call.1} parent=5 // pred_check
        _
      $region10: #{tpu_custom_call.1} parent=5 // pred_check_branch
        %144 = sbr.rel (%p141) target = $region12
      $region11: #{tpu_custom_call.1} parent=5 // pred_region
        %s145 = ssub.s32 %s16, 1
        // Predicated region
        $region13: #{tpu_custom_call.1} parent=11 // pred_check
          %p146 = pneg %p77
        $region14: #{tpu_custom_call.1} parent=11 // pred_check_branch
          %148 = sbr.rel (%p146) target = $region16
        $region15: #{tpu_custom_call.1} parent=11 // pred_region
          %150 = vsyncadd [#allocation6], 0
          %s151 = sshll.u32 %s1, 4
          %s152 = int_to_ptr.hbm [resolvable:$true] %s151
          %s153 = sshll.u32 [#allocation5], 4
          %s154 = int_to_ptr.vmem [resolvable:$true] %s153
          %159 = dma.hbm_to_vmem [thread:$0]  %s152, 256, %s154, [#allocation6], 64, 64, 4
        $region16: #{tpu_custom_call.1} parent=11 // pred_fallthru
          _
      $region12: #{tpu_custom_call.1} parent=5 // pred_fallthru
        _
      %p160 = scmp.lt.s32.totalorder %s16, 2
      // Predicated region
      $region17: #{tpu_custom_call.1} parent=5 // pred_check
        %p161 = pneg %p160
      $region18: #{tpu_custom_call.1} parent=5 // pred_check_branch
        %163 = sbr.rel (%p161) target = $region20
      $region19: #{tpu_custom_call.1} parent=5 // pred_region
        // Predicated region
        $region21: #{tpu_custom_call.1} parent=19 // pred_check
          %p164 = pneg %p50
        $region22: #{tpu_custom_call.1} parent=19 // pred_check_branch
          %166 = sbr.rel (%p164) target = $region24
        $region23: #{tpu_custom_call.1} parent=19 // pred_region
          %s167 = sand.u32 %s16, 1
          %s168 = scalar_lea.sflag [#allocation3], %s167
          %s169 = sand.u32 %s40, 1
          %s170 = smul.addr %s169, 4
          %s171 = scalar_lea.vmem [#allocation2], %s170
          %173 = vsyncadd %s168, 0
          %s174 = sadd.s32 %s23, %s24
          %s175 = smul.addr %s174, 4
          %s176 = scalar_lea.hbm %s0, %s175
          %s178 = sshll.u32 %s176, 4
          %s179 = int_to_ptr.hbm [resolvable:$true] %s178
          %s180 = sshll.u32 %s171, 4
          %s181 = int_to_ptr.vmem [resolvable:$true] %s180
          %183 = dma.hbm_to_vmem [thread:$0]  %s179, 64, %s181, %s168
        $region24: #{tpu_custom_call.1} parent=19 // pred_fallthru
          _
        // Predicated region
        $region25: #{tpu_custom_call.1} parent=19 // pred_check
          %p184 = pneg %p97
        $region26: #{tpu_custom_call.1} parent=19 // pred_check_branch
          %186 = sbr.rel (%p184) target = $region28
        $region27: #{tpu_custom_call.1} parent=19 // pred_region
          %s187 = sand.u32 %s16, 1
          %s188 = scalar_lea.sflag [#allocation3], %s187
          %s189 = sand.u32 %s87, 1
          %s190 = scalar_lea.vmem [#allocation7], %s189
          %192 = vsyncadd %s188, 0
          %s193 = scalar_lea.hbm %s2, %s24
          %s195 = sshll.u32 %s193, 4
          %s196 = int_to_ptr.hbm [resolvable:$true] %s195
          %s197 = sshll.u32 %s190, 4
          %s198 = int_to_ptr.vmem [resolvable:$true] %s197
          %200 = dma.hbm_to_vmem [thread:$0]  %s196, 16, %s198, %s188
        $region28: #{tpu_custom_call.1} parent=19 // pred_fallthru
          _
      $region20: #{tpu_custom_call.1} parent=5 // pred_fallthru
        _
      %p201 = scmp.le.s32.totalorder 1, %s16
      %p202 = scmp.lt.s32.totalorder %s16, 3
      %p203 = pnand %p201, %p202
      %p204 = pneg %p203
      // Predicated region
      $region29: #{tpu_custom_call.1} parent=5 // pred_check
        _
      $region30: #{tpu_custom_call.1} parent=5 // pred_check_branch
        %206 = sbr.rel (%p203) target = $region32
      $region31: #{tpu_custom_call.1} parent=5 // pred_region
        %s207 = ssub.s32 %s16, 1
        %s208 = sand.u32 %s21, 1
        %s209 = scalar_lea.sflag [#allocation3], %s208
        %s210 = sand.u32 %s43, 1
        %s211 = smul.addr %s210, 4
        %s212 = scalar_lea.vmem [#allocation2], %s211
        // Predicated region
        $region33: #{tpu_custom_call.1} parent=31 // pred_check
          %p213 = pneg %p56
        $region34: #{tpu_custom_call.1} parent=31 // pred_check_branch
          %215 = sbr.rel (%p213) target = $region36
        $region35: #{tpu_custom_call.1} parent=31 // pred_region
          %217 = dma.done %s209, 64
        $region36: #{tpu_custom_call.1} parent=31 // pred_fallthru
          _
        // Predicated region
        $region37: #{tpu_custom_call.1} parent=31 // pred_check
          %p218 = pneg %p77
        $region38: #{tpu_custom_call.1} parent=31 // pred_check_branch
          %220 = sbr.rel (%p218) target = $region40
        $region39: #{tpu_custom_call.1} parent=31 // pred_region
          %222 = dma.done [#allocation6], 256
        $region40: #{tpu_custom_call.1} parent=31 // pred_fallthru
          _
        %s223 = sand.u32 %s21, 1
        %s224 = scalar_lea.sflag [#allocation3], %s223
        %s225 = sand.u32 %s90, 1
        %s226 = scalar_lea.vmem [#allocation7], %s225
        // Predicated region
        $region41: #{tpu_custom_call.1} parent=31 // pred_check
          %p227 = pneg %p103
        $region42: #{tpu_custom_call.1} parent=31 // pred_check_branch
          %229 = sbr.rel (%p227) target = $region44
        $region43: #{tpu_custom_call.1} parent=31 // pred_region
          %231 = dma.done %s224, 16
        $region44: #{tpu_custom_call.1} parent=31 // pred_fallthru
          _
        %s232 = sand.u32 %s21, 1
        %s233 = scalar_lea.sflag [#allocation3], %s232
        %s234 = sand.u32 %s43, 1
        %s235 = smul.addr %s234, 4
        %s236 = scalar_lea.vmem [#allocation2], %s235
        %p237 = pneg %p56
        %p238 = pneg %p53
        %p239 = pneg %p77
        %p240 = pneg %p74
        %s241 = sand.u32 %s21, 1
        %s242 = scalar_lea.sflag [#allocation3], %s241
        %s243 = sand.u32 %s90, 1
        %s244 = scalar_lea.vmem [#allocation7], %s243
        %p245 = pneg %p103
        %p246 = pneg %p100
        %p247 = pneg %p131
        %p248 = pneg %p128
        %s249 = sand.u32 %s118, 1
        %s250 = scalar_lea.sflag [#allocation4], %s249
        %s251 = sand.u32 %s118, 1
        %s252 = smul.addr %s251, 8
        %s253 = scalar_lea.vmem [#allocation8], %s252
        %v255 = vld [vmem:[%s212] sm:$0xf]
        %v256 = vld [vmem:[#allocation5] sm:$0xf]
        %v257 = vld [vmem:[#allocation5 + $0x4] sm:$0xf]
        %v258 = vld [vmem:[#allocation5 + $0x8] sm:$0xf]
        %v259 = vld [vmem:[#allocation5 + $0xc] sm:$0xf]
        %v260 = vld [vmem:[%s226] sm:$0x1]
        %v262 = vperm.slane %v260, 0
        %v268 = vunpack.c.l.b16 %v256
        %v269 = vunpack.c.l.b16 %v257
        %v270 = vunpack.c.l.b16 %v258
        %v271 = vunpack.c.l.b16 %v259
        %v272 = vpack.c.b16 %v269, %v268
        %v273 = vpack.c.b16 %v271, %v270
        %vm276 = vcmask 261120
        %v278 = vsel %vm276, %v255, 0
        %280 = vmatpush.bf16.msra.mxu0 0
        %281 = vmatpush.bf16.msra.mxu0 0
        %282 = vmatpush.bf16.msra.mxu0 0
        %283 = vmatpush.bf16.msra.mxu0 0
        %284 = vmatpush.bf16.msra.mxu0 0
        %285 = vmatpush.bf16.msra.mxu0 0
        %286 = vmatpush.bf16.msra.mxu0 %v273
        %287 = vmatpush.bf16.msra.mxu0 %v272
        %288 = vmatmul.bf16.gmra.mxu0 %v278
        %v289 = vpop.f32.mrf.mxu0
        %v290 = vadd.f32 %v262, %v289
        %v291 = vpop.f32.mrf.mxu0
        %292 = vdwg.mxu0
        %v293 = vmul.f32 %v290, 0.5
        %v294 = vmul.f32 %v290, 0.70710677
        %v295 = vand.u32 2147483647, %v294
        %v296 = vmul.f32 %v295, 0.3275911
        %v297 = vadd.f32 %v296, 1.0
        %v298 = vrcp.pop %v297
        %v299 = vmul.f32 %v297, %v298
        %v300 = vsub.f32 1.0, %v299
        %v301 = vmul.f32 %v298, %v300
        %v302 = vadd.f32 %v298, %v301
        %vm303 = vweird.f32 %v297
        %vm304 = vweird.f32 %v298
        %vm305 = vmor %vm303, %vm304
        %v306 = vsel %vm305, %v298, %v302
        %v307 = vand.u32 2147483647, %v297
        %vm308 = vcmp.eq.f32.partialorder %v307, 8.507059e+37
        %v309 = vand.u32 %v297, 2147483648
        %v310 = vor.u32 1.1754944e-38, %v309
        %v311 = vsel %vm308, %v310, %v306
        %v312 = vmul.f32 1.0, %v311
        %v313 = vmul.f32 %v312, 1.0614054
        %v314 = vadd.f32 %v313, -1.4531521
        %v315 = vmul.f32 %v314, %v312
        %v316 = vadd.f32 %v315, 1.4214138
        %v317 = vmul.f32 %v316, %v312
        %v318 = vadd.f32 %v317, -0.28449672
        %v319 = vmul.f32 %v318, %v312
        %v320 = vadd.f32 %v319, 0.2548296
        %v321 = vmul.f32 %v320, %v312
        %v322 = vsub.f32 0.0, %v295
        %v323 = vmul.f32 %v322, %v295
        %v324 = vmul.f32 %v323, 1.442695
        %v325 = vpow.pop %v324
        %v326 = vmul.f32 %v321, %v325
        %v327 = vsub.f32 1.0, %v326
        %vm328 = vcmp.ge.f32.partialorder %v294, 0.0
        %v329 = vsub.f32 0.0, %v327
        %v330 = vsel %vm328, %v327, %v329
        %v331 = vadd.f32 %v330, 1.0
        %v332 = vmul.f32 %v293, %v331
        %333 = vst.msk [vmem:[%s253] sm:$0xff] %vm276, %v332
        %s334 = sand.u32 %s118, 1
        %s335 = scalar_lea.sflag [#allocation4], %s334
        %s336 = sand.u32 %s118, 1
        %s337 = smul.addr %s336, 8
        %s338 = scalar_lea.vmem [#allocation8], %s337
        // Predicated region
        $region45: #{tpu_custom_call.1} parent=31 // pred_check
          %p339 = pneg %p128
        $region46: #{tpu_custom_call.1} parent=31 // pred_check_branch
          %341 = sbr.rel (%p339) target = $region48
        $region47: #{tpu_custom_call.1} parent=31 // pred_region
          %343 = vsyncadd %s335, 0
          %s344 = sadd.s32 %s25, %s26
          %s345 = smul.addr %s344, 8
          %s346 = scalar_lea.hbm %s3, %s345
          %s348 = sshll.u32 %s338, 4
          %s349 = int_to_ptr.vmem [resolvable:$true] %s348
          %s350 = sshll.u32 %s346, 4
          %s351 = int_to_ptr.hbm [resolvable:$true] %s350
          %353 = dma.vmem_to_hbm [thread:$0]  %s349, 128, %s351, %s335
        $region48: #{tpu_custom_call.1} parent=31 // pred_fallthru
          _
      $region32: #{tpu_custom_call.1} parent=5 // pred_fallthru
        _
      %p354 = scmp.le.s32.totalorder 2, %s16
      // Predicated region
      $region49: #{tpu_custom_call.1} parent=5 // pred_check
        %p355 = pneg %p354
      $region50: #{tpu_custom_call.1} parent=5 // pred_check_branch
        %357 = sbr.rel (%p355) target = $region52
      $region51: #{tpu_custom_call.1} parent=5 // pred_region
        %s358 = ssub.s32 %s16, 2
        // Predicated region
        $region53: #{tpu_custom_call.1} parent=51 // pred_check
          %p359 = pneg %p134
        $region54: #{tpu_custom_call.1} parent=51 // pred_check_branch
          %361 = sbr.rel (%p359) target = $region56
        $region55: #{tpu_custom_call.1} parent=51 // pred_region
          %s362 = sand.u32 %s119, 1
          %s363 = scalar_lea.sflag [#allocation4], %s362
          %s364 = sand.u32 %s119, 1
          %s365 = smul.addr %s364, 8
          %s366 = scalar_lea.vmem [#allocation8], %s365
          %368 = dma.done %s363, 128
        $region56: #{tpu_custom_call.1} parent=51 // pred_fallthru
          _
      $region52: #{tpu_custom_call.1} parent=5 // pred_fallthru
        _
    $region6: #{tpu_custom_call.1} parent=1 // loop_footer
      %s20 = sadd.s32 1, %s16
    $region7: #{tpu_custom_call.1} parent=1 // loop_footer_branch
      %15 = sbr.rel target = $region3
    $region8: #{tpu_custom_call.1} parent=1 // loop_exit
      _
    %369 = vsyncpa [#allocation3], 1
    %s370 = scalar_lea.sflag [#allocation3], 1
    %371 = vsyncpa %s370, 1
    %372 = vsyncpa [#allocation6], 1
    %373 = vsyncpa [#allocation4], 1
    %s374 = scalar_lea.sflag [#allocation4], 1
    %375 = vsyncpa %s374, 1

// kernel: tpu_custom_call.1
$region0: #{tpu_custom_call.1}
  #allocation0 [shape = 'u32[]', space=smem, size = 0x4, offset = 0x4, fixed_abs, tag = 'smem constant byte address 0x4 - core index']
  #allocation1 [shape = 'u32[72,128]{1,0:T(1,128)}', space=vmem, size = 0x9000, scoped, tag = 'internal scratch']
  %s0 = inlined_call_operand.hbm [shape: bf16[2,8,32], index: 0, kind: input, shape index: {}]
  %s1 = inlined_call_operand.hbm [shape: bf16[32,32], index: 1, kind: input, shape index: {}]
  %s2 = inlined_call_operand.hbm [shape: f32[2,1,32], index: 2, kind: input, shape index: {}]
  %s3 = inlined_call_operand.hbm [shape: f32[2,8,32], index: 3, kind: output, shape index: {}]
  %s4 = sld [smem:[#allocation0]]
  $region57: #{tpu_custom_call.1} parent=0
    _
  %s6 = ssub.s32 1, %s4
  %s7 = scalar_select 0, %s6, %s4
  $region1: #{tpu_custom_call.1} parent=0
    #allocation2 [shape = 'u8[4096]{0}', space=vmem, size = 0x1000, scoped, tag = 'input window, operand 0']
    #allocation3 [shape = 's32[2]{0}', space=sflag, size = 0x8, scoped, tag = 'scoped memory for tpu_custom_call.1']
    #allocation4 [shape = 's32[2]{0}', space=sflag, size = 0x8, scoped, tag = 'scoped memory for tpu_custom_call.1']
    #allocation5 [shape = 'u8[8192]{0}', space=vmem, size = 0x2000, scoped, tag = 'input window, operand 1, single buffered']
    #allocation6 [shape = 's32[1]{0}', space=sflag, size = 0x4, scoped, tag = 'scoped memory for tpu_custom_call.1']
    #allocation7 [shape = 'u8[1024]{0}', space=vmem, size = 0x400, scoped, tag = 'input window, operand 2']
    #allocation8 [shape = 'u8[8192]{0}', space=vmem, size = 0x2000, scoped, tag = 'output window, operand 0']
    %8 = vsyncpa [#allocation3], 0
    %s9 = scalar_lea.sflag [#allocation3], 1
    %10 = vsyncpa %s9, 0
    %11 = vsyncpa [#allocation6], 0
    %12 = vsyncpa [#allocation4], 0
    %s13 = scalar_lea.sflag [#allocation4], 1
    %14 = vsyncpa %s13, 0
    loop: start=0, step=1, limit=4
    $region2: #{tpu_custom_call.1} parent=1 // loop_pre_header
      _
    $region3: #{tpu_custom_call.1} parent=1 // loop_header
      %s16 = sphi 0, %s20
      %p17 = scmp.ge.s32.totalorder %s16, 4
      %s23 = sphi 0, %s35
      %s24 = sphi 0, %s31
      %s25 = sphi 0, %s23
      %s26 = sphi 0, %s24
      %s27 = sphi 0, %s25
      %s28 = sphi 0, %s26
      %s40 = sphi 0, %s42
      %s43 = sphi 0, %s40
      %s44 = sphi 0, %s43
      %s60 = sphi 0, %s44
      %s64 = sphi 0, %s64
      %s66 = sphi 0, %s64
      %s67 = sphi 0, %s66
      %s81 = sphi 0, %s67
      %s87 = sphi 0, %s89
      %s90 = sphi 0, %s87
      %s91 = sphi 0, %s90
      %s107 = sphi 0, %s91
      %s115 = sphi 0, %s117
      %s118 = sphi 0, %s115
      %s119 = sphi 0, %s118
      %s135 = sphi 0, %s119
    $region4: #{tpu_custom_call.1} parent=1 // loop_header_branch
      %19 = sbr.rel (%p17) target = $region8
    $region5: #{tpu_custom_call.1} parent=1 // loop_body
      %s21 = ssub.s32 %s16, 1
      %s22 = ssub.s32 %s16, 2
      %s29 = sadd.s32 1, %s24
      %p30 = scmp.ge.s32.totalorder %s29, 2
      %s31 = scalar_select %p30, 0, %s29
      %s32 = sadd.s32 1, %s23
      %s33 = scalar_select %p30, %s32, %s23
      %p34 = scmp.ge.s32.totalorder %s33, 1
      %s35 = scalar_select %p34, 0, %s33
      %s36 = ssub.s32 %s24, %s31
      %s37 = ssub.s32 %s23, %s35
      %s38 = sor.u32 %s36, %s37
      %p39 = scmp.eq.s32.totalorder %s38, 0
      %s41 = sadd.s32 %s40, 1
      %s42 = scalar_select %p39, %s40, %s41
      %p45 = pneg %p39
      %p46 = scmp.eq.s32.totalorder %s16, 1
      %p47 = por %p45, %p46
      %p48 = scmp.ne.s32.totalorder %s40, %s43
      %p49 = scmp.eq.s32.totalorder %s16, 0
      %p50 = por %p48, %p49
      %p51 = scmp.ne.s32.totalorder %s40, %s43
      %p52 = scmp.eq.s32.totalorder %s21, 1
      %p53 = por %p51, %p52
      %p54 = scmp.ne.s32.totalorder %s43, %s44
      %p55 = scmp.eq.s32.totalorder %s21, 0
      %p56 = por %p54, %p55
      %p57 = scmp.ne.s32.totalorder %s43, %s44
      %p58 = scmp.eq.s32.totalorder %s22, 1
      %p59 = por %p57, %p58
      %p61 = scmp.ne.s32.totalorder %s44, %s60
      %p62 = scmp.eq.s32.totalorder %s22, 0
      %p63 = por %p61, %p62
      %s65 = sadd.s32 %s64, 1
      %p68 = scmp.eq.s32.totalorder %s16, 1
      %p69 = scmp.ne.s32.totalorder %s64, %s66
      %p70 = scmp.eq.s32.totalorder %s16, 0
      %p71 = por %p69, %p70
      %p72 = scmp.ne.s32.totalorder %s64, %s66
      %p73 = scmp.eq.s32.totalorder %s21, 1
      %p74 = por %p72, %p73
      %p75 = scmp.ne.s32.totalorder %s66, %s67
      %p76 = scmp.eq.s32.totalorder %s21, 0
      %p77 = por %p75, %p76
      %p78 = scmp.ne.s32.totalorder %s66, %s67
      %p79 = scmp.eq.s32.totalorder %s22, 1
      %p80 = por %p78, %p79
      %p82 = scmp.ne.s32.totalorder %s67, %s81
      %p83 = scmp.eq.s32.totalorder %s22, 0
      %p84 = por %p82, %p83
      %s85 = ssub.s32 %s24, %s31
      %p86 = scmp.eq.s32.totalorder %s85, 0
      %s88 = sadd.s32 %s87, 1
      %s89 = scalar_select %p86, %s87, %s88
      %p92 = pneg %p86
      %p93 = scmp.eq.s32.totalorder %s16, 1
      %p94 = por %p92, %p93
      %p95 = scmp.ne.s32.totalorder %s87, %s90
      %p96 = scmp.eq.s32.totalorder %s16, 0
      %p97 = por %p95, %p96
      %p98 = scmp.ne.s32.totalorder %s87, %s90
      %p99 = scmp.eq.s32.totalorder %s21, 1
      %p100 = por %p98, %p99
      %p101 = scmp.ne.s32.totalorder %s90, %s91
      %p102 = scmp.eq.s32.totalorder %s21, 0
      %p103 = por %p101, %p102
      %p104 = scmp.ne.s32.totalorder %s90, %s91
      %p105 = scmp.eq.s32.totalorder %s22, 1
      %p106 = por %p104, %p105
      %p108 = scmp.ne.s32.totalorder %s91, %s107
      %p109 = scmp.eq.s32.totalorder %s22, 0
      %p110 = por %p108, %p109
      %s111 = ssub.s32 %s24, %s31
      %s112 = ssub.s32 %s23, %s35
      %s113 = sor.u32 %s111, %s112
      %p114 = scmp.eq.s32.totalorder %s113, 0
      %s116 = sadd.s32 %s115, 1
      %s117 = scalar_select %p114, %s115, %s116
      %p120 = pneg %p114
      %p121 = scmp.eq.s32.totalorder %s16, 1
      %p122 = por %p120, %p121
      %p123 = scmp.ne.s32.totalorder %s115, %s118
      %p124 = scmp.eq.s32.totalorder %s16, 0
      %p125 = por %p123, %p124
      %p126 = scmp.ne.s32.totalorder %s115, %s118
      %p127 = scmp.eq.s32.totalorder %s21, 1
      %p128 = por %p126, %p127
      %p129 = scmp.ne.s32.totalorder %s118, %s119
      %p130 = scmp.eq.s32.totalorder %s21, 0
      %p131 = por %p129, %p130
      %p132 = scmp.ne.s32.totalorder %s118, %s119
      %p133 = scmp.eq.s32.totalorder %s22, 1
      %p134 = por %p132, %p133
      %p136 = scmp.ne.s32.totalorder %s119, %s135
      %p137 = scmp.eq.s32.totalorder %s22, 0
      %p138 = por %p136, %p137
      %p139 = scmp.le.s32.totalorder 1, %s16
      %p140 = scmp.lt.s32.totalorder %s16, 3
      %p141 = pnand %p139, %p140
      %p142 = pneg %p141
      // Predicated region
      $region9: #{tpu_custom_call.1} parent=5 // pred_check
        _
      $region10: #{tpu_custom_call.1} parent=5 // pred_check_branch
        %144 = sbr.rel (%p141) target = $region12
      $region11: #{tpu_custom_call.1} parent=5 // pred_region
        %s145 = ssub.s32 %s16, 1
        // Predicated region
        $region13: #{tpu_custom_call.1} parent=11 // pred_check
          %p146 = pneg %p77
        $region14: #{tpu_custom_call.1} parent=11 // pred_check_branch
          %148 = sbr.rel (%p146) target = $region16
        $region15: #{tpu_custom_call.1} parent=11 // pred_region
          %150 = vsyncadd [#allocation6], 0
          %s151 = sshll.u32 %s1, 4
          %s152 = int_to_ptr.hbm [resolvable:$true] %s151
          %s153 = sshll.u32 [#allocation5], 4
          %s154 = int_to_ptr.vmem [resolvable:$true] %s153
          %159 = dma.hbm_to_vmem [thread:$0]  %s152, 256, %s154, [#allocation6], 64, 64, 4
        $region16: #{tpu_custom_call.1} parent=11 // pred_fallthru
          _
      $region12: #{tpu_custom_call.1} parent=5 // pred_fallthru
        _
      %p160 = scmp.lt.s32.totalorder %s16, 2
      // Predicated region
      $region17: #{tpu_custom_call.1} parent=5 // pred_check
        %p161 = pneg %p160
      $region18: #{tpu_custom_call.1} parent=5 // pred_check_branch
        %163 = sbr.rel (%p161) target = $region20
      $region19: #{tpu_custom_call.1} parent=5 // pred_region
        // Predicated region
        $region21: #{tpu_custom_call.1} parent=19 // pred_check
          %p164 = pneg %p50
        $region22: #{tpu_custom_call.1} parent=19 // pred_check_branch
          %166 = sbr.rel (%p164) target = $region24
        $region23: #{tpu_custom_call.1} parent=19 // pred_region
          %s167 = sand.u32 %s16, 1
          %s168 = scalar_lea.sflag [#allocation3], %s167
          %s169 = sand.u32 %s40, 1
          %s170 = smul.addr %s169, 4
          %s171 = scalar_lea.vmem [#allocation2], %s170
          %173 = vsyncadd %s168, 0
          %s174 = sadd.s32 %s23, %s24
          %s175 = smul.addr %s174, 4
          %s176 = scalar_lea.hbm %s0, %s175
          %s178 = sshll.u32 %s176, 4
          %s179 = int_to_ptr.hbm [resolvable:$true] %s178
          %s180 = sshll.u32 %s171, 4
          %s181 = int_to_ptr.vmem [resolvable:$true] %s180
          %183 = dma.hbm_to_vmem [thread:$0]  %s179, 64, %s181, %s168
        $region24: #{tpu_custom_call.1} parent=19 // pred_fallthru
          _
        // Predicated region
        $region25: #{tpu_custom_call.1} parent=19 // pred_check
          %p184 = pneg %p97
        $region26: #{tpu_custom_call.1} parent=19 // pred_check_branch
          %186 = sbr.rel (%p184) target = $region28
        $region27: #{tpu_custom_call.1} parent=19 // pred_region
          %s187 = sand.u32 %s16, 1
          %s188 = scalar_lea.sflag [#allocation3], %s187
          %s189 = sand.u32 %s87, 1
          %s190 = scalar_lea.vmem [#allocation7], %s189
          %192 = vsyncadd %s188, 0
          %s193 = scalar_lea.hbm %s2, %s24
          %s195 = sshll.u32 %s193, 4
          %s196 = int_to_ptr.hbm [resolvable:$true] %s195
          %s197 = sshll.u32 %s190, 4
          %s198 = int_to_ptr.vmem [resolvable:$true] %s197
          %200 = dma.hbm_to_vmem [thread:$0]  %s196, 16, %s198, %s188
        $region28: #{tpu_custom_call.1} parent=19 // pred_fallthru
          _
      $region20: #{tpu_custom_call.1} parent=5 // pred_fallthru
        _
      %p201 = scmp.le.s32.totalorder 1, %s16
      %p202 = scmp.lt.s32.totalorder %s16, 3
      %p203 = pnand %p201, %p202
      %p204 = pneg %p203
      // Predicated region
      $region29: #{tpu_custom_call.1} parent=5 // pred_check
        _
      $region30: #{tpu_custom_call.1} parent=5 // pred_check_branch
        %206 = sbr.rel (%p203) target = $region32
      $region31: #{tpu_custom_call.1} parent=5 // pred_region
        %s207 = ssub.s32 %s16, 1
        %s208 = sand.u32 %s21, 1
        %s209 = scalar_lea.sflag [#allocation3], %s208
        %s210 = sand.u32 %s43, 1
        %s211 = smul.addr %s210, 4
        %s212 = scalar_lea.vmem [#allocation2], %s211
        // Predicated region
        $region33: #{tpu_custom_call.1} parent=31 // pred_check
          %p213 = pneg %p56
        $region34: #{tpu_custom_call.1} parent=31 // pred_check_branch
          %215 = sbr.rel (%p213) target = $region36
        $region35: #{tpu_custom_call.1} parent=31 // pred_region
          %217 = dma.done %s209, 64
        $region36: #{tpu_custom_call.1} parent=31 // pred_fallthru
          _
        // Predicated region
        $region37: #{tpu_custom_call.1} parent=31 // pred_check
          %p218 = pneg %p77
        $region38: #{tpu_custom_call.1} parent=31 // pred_check_branch
          %220 = sbr.rel (%p218) target = $region40
        $region39: #{tpu_custom_call.1} parent=31 // pred_region
          %222 = dma.done [#allocation6], 256
        $region40: #{tpu_custom_call.1} parent=31 // pred_fallthru
          _
        %s223 = sand.u32 %s21, 1
        %s224 = scalar_lea.sflag [#allocation3], %s223
        %s225 = sand.u32 %s90, 1
        %s226 = scalar_lea.vmem [#allocation7], %s225
        // Predicated region
        $region41: #{tpu_custom_call.1} parent=31 // pred_check
          %p227 = pneg %p103
        $region42: #{tpu_custom_call.1} parent=31 // pred_check_branch
          %229 = sbr.rel (%p227) target = $region44
        $region43: #{tpu_custom_call.1} parent=31 // pred_region
          %231 = dma.done %s224, 16
        $region44: #{tpu_custom_call.1} parent=31 // pred_fallthru
          _
        %s232 = sand.u32 %s21, 1
        %s233 = scalar_lea.sflag [#allocation3], %s232
        %s234 = sand.u32 %s43, 1
        %s235 = smul.addr %s234, 4
        %s236 = scalar_lea.vmem [#allocation2], %s235
        %p237 = pneg %p56
        %p238 = pneg %p53
        %p239 = pneg %p77
        %p240 = pneg %p74
        %s241 = sand.u32 %s21, 1
        %s242 = scalar_lea.sflag [#allocation3], %s241
        %s243 = sand.u32 %s90, 1
        %s244 = scalar_lea.vmem [#allocation7], %s243
        %p245 = pneg %p103
        %p246 = pneg %p100
        %p247 = pneg %p131
        %p248 = pneg %p128
        %s249 = sand.u32 %s118, 1
        %s250 = scalar_lea.sflag [#allocation4], %s249
        %s251 = sand.u32 %s118, 1
        %s252 = smul.addr %s251, 8
        %s253 = scalar_lea.vmem [#allocation8], %s252
        %v255 = vld [vmem:[%s212] sm:$0xf]
        %v256 = vld [vmem:[#allocation5] sm:$0xf]
        %v257 = vld [vmem:[#allocation5 + $0x4] sm:$0xf]
        %v258 = vld [vmem:[#allocation5 + $0x8] sm:$0xf]
        %v259 = vld [vmem:[#allocation5 + $0xc] sm:$0xf]
        %v260 = vld [vmem:[%s226] sm:$0x1]
        %v262 = vperm.slane %v260, 0
        %v268 = vunpack.c.l.b16 %v256
        %v269 = vunpack.c.l.b16 %v257
        %v270 = vunpack.c.l.b16 %v258
        %v271 = vunpack.c.l.b16 %v259
        %v272 = vpack.c.b16 %v269, %v268
        %v273 = vpack.c.b16 %v271, %v270
        %vm276 = vcmask 261120
        %v278 = vsel %vm276, %v255, 0
        %280 = vmatpush.bf16.msra.mxu0 0
        %281 = vmatpush.bf16.msra.mxu0 0
        %282 = vmatpush.bf16.msra.mxu0 0
        %283 = vmatpush.bf16.msra.mxu0 0
        %284 = vmatpush.bf16.msra.mxu0 0
        %285 = vmatpush.bf16.msra.mxu0 0
        %286 = vmatpush.bf16.msra.mxu0 %v273
        %287 = vmatpush.bf16.msra.mxu0 %v272
        %288 = vmatmul.bf16.gmra.mxu0 %v278
        %v289 = vpop.f32.mrf.mxu0
        %v290 = vadd.f32 %v262, %v289
        %v291 = vpop.f32.mrf.mxu0
        %292 = vdwg.mxu0
        %v293 = vmul.f32 %v290, 0.5
        %v294 = vmul.f32 %v290, 0.70710677
        %v295 = vand.u32 2147483647, %v294
        %v296 = vmul.f32 %v295, 0.3275911
        %v297 = vadd.f32 %v296, 1.0
        %v298 = vrcp.pop %v297
        %v299 = vmul.f32 %v297, %v298
        %v300 = vsub.f32 1.0, %v299
        %v301 = vmul.f32 %v298, %v300
        %v302 = vadd.f32 %v298, %v301
        %vm303 = vweird.f32 %v297
        %vm304 = vweird.f32 %v298
        %vm305 = vmor %vm303, %vm304
        %v306 = vsel %vm305, %v298, %v302
        %v307 = vand.u32 2147483647, %v297
        %vm308 = vcmp.eq.f32.partialorder %v307, 8.507059e+37
        %v309 = vand.u32 %v297, 2147483648
        %v310 = vor.u32 1.1754944e-38, %v309
        %v311 = vsel %vm308, %v310, %v306
        %v312 = vmul.f32 1.0, %v311
        %v313 = vmul.f32 %v312, 1.0614054
        %v314 = vadd.f32 %v313, -1.4531521
        %v315 = vmul.f32 %v314, %v312
        %v316 = vadd.f32 %v315, 1.4214138
        %v317 = vmul.f32 %v316, %v312
        %v318 = vadd.f32 %v317, -0.28449672
        %v319 = vmul.f32 %v318, %v312
        %v320 = vadd.f32 %v319, 0.2548296
        %v321 = vmul.f32 %v320, %v312
        %v322 = vsub.f32 0.0, %v295
        %v323 = vmul.f32 %v322, %v295
        %v324 = vmul.f32 %v323, 1.442695
        %v325 = vpow.pop %v324
        %v326 = vmul.f32 %v321, %v325
        %v327 = vsub.f32 1.0, %v326
        %vm328 = vcmp.ge.f32.partialorder %v294, 0.0
        %v329 = vsub.f32 0.0, %v327
        %v330 = vsel %vm328, %v327, %v329
        %v331 = vadd.f32 %v330, 1.0
        %v332 = vmul.f32 %v293, %v331
        %333 = vst.msk [vmem:[%s253] sm:$0xff] %vm276, %v332
        %s334 = sand.u32 %s118, 1
        %s335 = scalar_lea.sflag [#allocation4], %s334
        %s336 = sand.u32 %s118, 1
        %s337 = smul.addr %s336, 8
        %s338 = scalar_lea.vmem [#allocation8], %s337
        // Predicated region
        $region45: #{tpu_custom_call.1} parent=31 // pred_check
          %p339 = pneg %p128
        $region46: #{tpu_custom_call.1} parent=31 // pred_check_branch
          %341 = sbr.rel (%p339) target = $region48
        $region47: #{tpu_custom_call.1} parent=31 // pred_region
          %343 = vsyncadd %s335, 0
          %s344 = sadd.s32 %s25, %s26
          %s345 = smul.addr %s344, 8
          %s346 = scalar_lea.hbm %s3, %s345
          %s348 = sshll.u32 %s338, 4
          %s349 = int_to_ptr.vmem [resolvable:$true] %s348
          %s350 = sshll.u32 %s346, 4
          %s351 = int_to_ptr.hbm [resolvable:$true] %s350
          %353 = dma.vmem_to_hbm [thread:$0]  %s349, 128, %s351, %s335
        $region48: #{tpu_custom_call.1} parent=31 // pred_fallthru
          _
      $region32: #{tpu_custom_call.1} parent=5 // pred_fallthru
        _
      %p354 = scmp.le.s32.totalorder 2, %s16
      // Predicated region
      $region49: #{tpu_custom_call.1} parent=5 // pred_check
        %p355 = pneg %p354
      $region50: #{tpu_custom_call.1} parent=5 // pred_check_branch
        %357 = sbr.rel (%p355) target = $region52
      $region51: #{tpu_custom_call.1} parent=5 // pred_region
        %s358 = ssub.s32 %s16, 2
        // Predicated region
        $region53: #{tpu_custom_call.1} parent=51 // pred_check
          %p359 = pneg %p134
        $region54: #{tpu_custom_call.1} parent=51 // pred_check_branch
          %361 = sbr.rel (%p359) target = $region56
        $region55: #{tpu_custom_call.1} parent=51 // pred_region
          %s362 = sand.u32 %s119, 1
          %s363 = scalar_lea.sflag [#allocation4], %s362
          %s364 = sand.u32 %s119, 1
          %s365 = smul.addr %s364, 8
          %s366 = scalar_lea.vmem [#allocation8], %s365
          %368 = dma.done %s363, 128
        $region56: #{tpu_custom_call.1} parent=51 // pred_fallthru
          _
      $region52: #{tpu_custom_call.1} parent=5 // pred_fallthru
        _
    $region6: #{tpu_custom_call.1} parent=1 // loop_footer
      %s20 = sadd.s32 1, %s16
    $region7: #{tpu_custom_call.1} parent=1 // loop_footer_branch
      %15 = sbr.rel target = $region3
    $region8: #{tpu_custom_call.1} parent=1 // loop_exit
      _
    %369 = vsyncpa [#allocation3], 1
    %s370 = scalar_lea.sflag [#allocation3], 1
    %371 = vsyncpa %s370, 1
    %372 = vsyncpa [#allocation6], 1
    %373 = vsyncpa [#allocation4], 1
    %s374 = scalar_lea.sflag [#allocation4], 1
    %375 = vsyncpa %s374, 1

</llo_original>
